<compile_context>
chip_gen: v6e
topology: v6e:2x2x1
jax: 0.10.0
libtpu: 0.0.40
codegen_flags: <defaults>
</compile_context>

<pallas_src>
import math
import functools

import jax
import jax.numpy as jnp
from jax.experimental import pallas as pl
from jax.experimental.pallas import tpu as pltpu

EMBED = 256
HEADS = 4            # heads in the torch module (mathematically dead for seq_len == 1)
HIDDEN = 128
LN_EPS = 1e-5        # torch.nn.LayerNorm default
HALF_LOG_2PI = 0.5 * math.log(2.0 * math.pi)


def _round_up(x, m):
    return (x + m - 1) // m * m


def _layernorm(x, gamma, beta):
    # Single-pass LN: one sweep for mean and E[x^2]; var = E[x^2] - mu^2.
    mu = jnp.mean(x, axis=-1, keepdims=True)
    ex2 = jnp.mean(x * x, axis=-1, keepdims=True)
    var = jnp.maximum(ex2 - mu * mu, 0.0)
    return (x - mu) * jax.lax.rsqrt(var + LN_EPS) * gamma + beta


def actor_kernel(state_ref, noise_ref,
                 w_in_ref, b_in_ref, g1_ref, be1_ref,
                 w_big_ref, b_big_ref, g2_ref, be2_ref,
                 w_head_ref, b_head_ref,
                 out_ref, *, out_dim, matmul_dtype):
    def mm(x, w_ref, b_ref):
        # MXU matmul with f32 accumulation; operands optionally bf16.
        return jnp.dot(x.astype(matmul_dtype), w_ref[...],
                       preferred_element_type=jnp.float32) + b_ref[...]

    # x = relu(ln1(input_layer(state)))
    x = jax.nn.relu(_layernorm(mm(state_ref[...], w_in_ref, b_in_ref),
                               g1_ref[...], be1_ref[...]))            # (TB, 256)

    # Attention (seq_len==1 => softmax==1 => fc_out(values(x))), its residual, fc1
    # and input_layer_residual are pre-fused wrapper-side into one 256x256 matmul.
    y = mm(x, w_big_ref, b_big_ref)                                   # (TB, 256)
    x_fc1 = jax.nn.relu(_layernorm(y[:, :HIDDEN], g2_ref[...], be2_ref[...]))
    x = x_fc1 + y[:, HIDDEN:]                                         # (TB, 128)

    # Fused mean / log_std heads.
    heads = mm(x, w_head_ref, b_head_ref)                             # (TB, 2*out_dim)
    mean = heads[:, :out_dim]
    log_std = jnp.clip(heads[:, out_dim:], -20.0, 2.0)
    std = jnp.exp(log_std)

    # Reparameterized sample (standard-normal noise supplied as input).
    noise = noise_ref[...]
    action = mean + std * noise
    # Normal log_prob summed over the action dim; with action = mean + std*noise:
    #   -(action-mean)^2/(2 std^2) - log_std - 0.5 log(2 pi)
    #     == -0.5 noise^2 - log_std - 0.5 log(2 pi)
    log_prob = jnp.sum(-0.5 * noise * noise - log_std - HALF_LOG_2PI,
                       axis=-1, keepdims=True)

    # Single merged output slab: [action | log_prob].
    out_ref[...] = jnp.concatenate([action, log_prob], axis=-1)


@functools.partial(jax.jit, static_argnames=("block_b", "matmul_dtype"))
def actor_forward(state, noise, params, *, block_b=1024, matmul_dtype=jnp.bfloat16):
    B, input_dim = state.shape
    out_dim = noise.shape[1]
    f32 = jnp.float32
    hi = jax.lax.Precision.HIGHEST

    # Batch tiling: guarantee >=2 tiles once B >= 16 (both v7x TCs busy), cap at
    # block_b, keep tiles a multiple of 8 sublanes.
    TB = min(block_b, max(8, _round_up(-(-B // 2), 8)))
    B_pad = _round_up(B, TB)
    if B_pad != B:
        pad = B_pad - B
        state = jnp.pad(state, ((0, pad), (0, 0)))
        noise = jnp.pad(noise, ((0, pad), (0, 0)))

    # ---- wrapper-side algebraic fusion (composed in f32, cast at the very end) ----
    wv, wo = params["wv"].astype(f32), params["wo"].astype(f32)
    bv, bo = params["bv"].astype(f32), params["bo"].astype(f32)
    w_fc = jnp.concatenate([params["w1"], params["wr"]], axis=1).astype(f32)   # (256,256)
    b_fc = jnp.concatenate([params["b1"], params["br"]]).astype(f32)           # (256,)
    mix = jnp.eye(EMBED, dtype=f32) + jnp.dot(wv, wo, precision=hi)            # I + Wv@Wo
    w_big = jnp.dot(mix, w_fc, precision=hi)                                   # (256,256)
    b_big = jnp.dot(jnp.dot(bv, wo, precision=hi) + bo, w_fc, precision=hi) + b_fc
    w_head = jnp.concatenate([params["wm"], params["ws"]], axis=1).astype(f32)  # (128,2*out)
    b_head = jnp.concatenate([params["bm"], params["bs"]]).astype(f32)

    # MXU operands in matmul_dtype; biases / LN params stay f32.
    w_in = params["w_in"].astype(matmul_dtype)
    w_big = w_big.astype(matmul_dtype)
    w_head = w_head.astype(matmul_dtype)

    def row(v):
        return v.astype(f32)[None, :]

    ordered = [state, noise,
               w_in, row(params["b_in"]), row(params["g1"]), row(params["be1"]),
               w_big, row(b_big), row(params["g2"]), row(params["be2"]),
               w_head, row(b_head)]

    def tile_spec(d):
        return pl.BlockSpec((TB, d), lambda i: (i, 0))

    def resident(a):
        # Same block index every grid step -> loaded once, stays VMEM-resident.
        return pl.BlockSpec(a.shape, lambda i, _nd=a.ndim: (0,) * _nd)

    in_specs = ([tile_spec(input_dim), tile_spec(out_dim)]
                + [resident(a) for a in ordered[2:]])

    grid = (B_pad // TB,)
    wbytes = jnp.dtype(matmul_dtype).itemsize
    mxu_elems = input_dim * EMBED + EMBED * EMBED + HIDDEN * 2 * out_dim
    flops = 2 * B_pad * mxu_elems
    bytes_accessed = (4 * B_pad * (input_dim + 2 * out_dim + 1)      # state+noise+out
                      + wbytes * mxu_elems                           # matmul weights
                      + 4 * (4 * EMBED + 2 * HIDDEN + 2 * out_dim))  # biases / LN params

    kernel = functools.partial(actor_kernel, out_dim=out_dim, matmul_dtype=matmul_dtype)

    out = pl.pallas_call(
        kernel,
        out_shape=jax.ShapeDtypeStruct((B_pad, out_dim + 1), f32),
        grid_spec=pltpu.PrefetchScalarGridSpec(
            num_scalar_prefetch=0,
            grid=grid,
            in_specs=in_specs,
            out_specs=tile_spec(out_dim + 1),
        ),
        compiler_params=pltpu.CompilerParams(
            dimension_semantics=("parallel",),          # shard batch tiles across TCs
            vmem_limit_bytes=32 * 1024 * 1024,
        ),
        cost_estimate=pl.CostEstimate(flops=flops,
                                      transcendentals=B_pad * (out_dim + 2),
                                      bytes_accessed=bytes_accessed),
    )(*ordered)
    return out[:B, :out_dim], out[:B, out_dim]


def actor_reference(state, noise, params):
    """Pure-JAX reference with the FULL torch attention path (q/k, heads, softmax)."""
    dot = lambda a, b: jnp.dot(a, b, precision=jax.lax.Precision.HIGHEST)

    def ln(x, g, b):
        mu = x.mean(-1, keepdims=True)
        var = ((x - mu) ** 2).mean(-1, keepdims=True)
        return (x - mu) * jax.lax.rsqrt(var + LN_EPS) * g + b

    x = jax.nn.relu(ln(dot(state, params["w_in"]) + params["b_in"],
                       params["g1"], params["be1"]))
    B = x.shape[0]
    q = (dot(x, params["wq"]) + params["bq"]).reshape(B, 1, HEADS, EMBED // HEADS)
    k = (dot(x, params["wk"]) + params["bk"]).reshape(B, 1, HEADS, EMBED // HEADS)
    v = (dot(x, params["wv"]) + params["bv"]).reshape(B, 1, HEADS, EMBED // HEADS)
    energy = jnp.einsum("bqhd,bkhd->bhqk", q, k)
    attn = jax.nn.softmax(energy / math.sqrt(EMBED), axis=3)
    out = jnp.einsum("bhqk,bkhd->bqhd", attn, v).reshape(B, 1, EMBED)
    x = x + (dot(out[:, 0], params["wo"]) + params["bo"])

    x_fc1 = jax.nn.relu(ln(dot(x, params["w1"]) + params["b1"],
                           params["g2"], params["be2"]))
    x = x_fc1 + dot(x, params["wr"]) + params["br"]

    mean = dot(x, params["wm"]) + params["bm"]
    log_std = jnp.clip(dot(x, params["ws"]) + params["bs"], -20.0, 2.0)
    std = jnp.exp(log_std)
    action = mean + std * noise
    log_prob = (-((action - mean) ** 2) / (2.0 * std * std)
                - log_std - HALF_LOG_2PI).sum(-1)
    return action, log_prob


def init_params(key, input_dim, output_dim):
    """Synthetic init matching the torch module's parameter shapes/initializers."""
    keys = iter(jax.random.split(key, 24))
    nxt = lambda: next(keys)

    def kaiming(fan_in, fan_out):   # kaiming_normal_, relu gain
        return jax.random.normal(nxt(), (fan_in, fan_out), jnp.float32) * math.sqrt(2.0 / fan_in)

    def xavier(fan_in, fan_out):    # xavier_uniform_
        bound = math.sqrt(6.0 / (fan_in + fan_out))
        return jax.random.uniform(nxt(), (fan_in, fan_out), jnp.float32, -bound, bound)

    def default_w(fan_in, fan_out):  # torch Linear default
        bound = 1.0 / math.sqrt(fan_in)
        return jax.random.uniform(nxt(), (fan_in, fan_out), jnp.float32, -bound, bound)

    def bias(fan_in, fan_out):
        bound = 1.0 / math.sqrt(fan_in)
        return jax.random.uniform(nxt(), (fan_out,), jnp.float32, -bound, bound)

    return {
        "w_in": kaiming(input_dim, EMBED), "b_in": bias(input_dim, EMBED),
        "g1": jnp.ones((EMBED,), jnp.float32), "be1": jnp.zeros((EMBED,), jnp.float32),
        # q/k kept for parameter-set fidelity; they are mathematically dead (seq_len == 1).
        "wv": default_w(EMBED, EMBED), "bv": bias(EMBED, EMBED),
        "wk": default_w(EMBED, EMBED), "bk": bias(EMBED, EMBED),
        "wq": default_w(EMBED, EMBED), "bq": bias(EMBED, EMBED),
        "wo": default_w(EMBED, EMBED), "bo": bias(EMBED, EMBED),
        "w1": kaiming(EMBED, HIDDEN), "b1": bias(EMBED, HIDDEN),
        "g2": jnp.ones((HIDDEN,), jnp.float32), "be2": jnp.zeros((HIDDEN,), jnp.float32),
        "wr": default_w(EMBED, HIDDEN), "br": bias(EMBED, HIDDEN),
        "wm": xavier(HIDDEN, output_dim), "bm": bias(HIDDEN, output_dim),
        "ws": xavier(HIDDEN, output_dim), "bs": bias(HIDDEN, output_dim),
    }


if __name__ == "__main__":
    B, INPUT_DIM, OUTPUT_DIM = 8, 16, 8   # B multiple of 8 (f32 sublane tile)

    key = jax.random.PRNGKey(0)
    k_state, k_noise, k_params = jax.random.split(key, 3)

    state = jax.random.normal(k_state, (B, INPUT_DIM), jnp.float32)
    noise = jax.random.normal(k_noise, (B, OUTPUT_DIM), jnp.float32)  # standard-normal sample noise
    params = init_params(k_params, INPUT_DIM, OUTPUT_DIM)

    # Exact-semantics f32 path, checked against the full-attention reference.
    action_f32, logprob_f32 = actor_forward(state, noise, params,
                                            matmul_dtype=jnp.float32)
    jax.block_until_ready((action_f32, logprob_f32))
    assert action_f32.shape == (B, OUTPUT_DIM)
    assert logprob_f32.shape == (B,)

    ref_action, ref_logprob = actor_reference(state, noise, params)
    assert bool(jnp.allclose(action_f32, ref_action, rtol=2e-3, atol=2e-3))
    assert bool(jnp.allclose(logprob_f32, ref_logprob, rtol=2e-3, atol=2e-3))

    # Default bf16 MXU-operand path (v5e/v6e/v7x throughput): checked against f32 output.
    action, logprob = actor_forward(state, noise, params)
    jax.block_until_ready((action, logprob))
    assert bool(jnp.all(jnp.isfinite(action)))
    assert bool(jnp.all(jnp.isfinite(logprob)))
    assert bool(jnp.allclose(action, action_f32, rtol=2e-2, atol=5e-2))
    assert bool(jnp.allclose(logprob, logprob_f32, rtol=2e-2, atol=5e-2))

    print("KERNEL_OK")
</pallas_src>

<mosaic_0001>
module attributes {stable_mosaic.version = 11 : i64} {
  func.func @actor_kernel(%arg0: i32, %arg1: memref<8x16xf32, #tpu.memory_space<vmem>>, %arg2: memref<8x8xf32, #tpu.memory_space<vmem>>, %arg3: memref<16x256xf32, #tpu.memory_space<vmem>>, %arg4: memref<1x256xf32, #tpu.memory_space<vmem>>, %arg5: memref<1x256xf32, #tpu.memory_space<vmem>>, %arg6: memref<1x256xf32, #tpu.memory_space<vmem>>, %arg7: memref<256x256xf32, #tpu.memory_space<vmem>>, %arg8: memref<1x256xf32, #tpu.memory_space<vmem>>, %arg9: memref<1x128xf32, #tpu.memory_space<vmem>>, %arg10: memref<1x128xf32, #tpu.memory_space<vmem>>, %arg11: memref<128x16xf32, #tpu.memory_space<vmem>>, %arg12: memref<1x16xf32, #tpu.memory_space<vmem>>, %arg13: memref<8x9xf32, #tpu.memory_space<vmem>>) attributes {dimension_semantics = [#tpu.dimension_semantics<parallel>], iteration_bounds = array<i64: 1>, scalar_prefetch = 0 : i64, scratch_operands = 0 : i64, tpu.core_type = #tpu.core_type<tc>, window_params = [{transform_indices = @transform_0, window_bounds = array<i64: 8, 16>}, {transform_indices = @transform_1, window_bounds = array<i64: 8, 8>}, {pipeline_mode = #tpu.pipeline_mode<synchronous>, transform_indices = @transform_2, window_bounds = array<i64: 16, 256>}, {pipeline_mode = #tpu.pipeline_mode<synchronous>, transform_indices = @transform_3, window_bounds = array<i64: 1, 256>}, {pipeline_mode = #tpu.pipeline_mode<synchronous>, transform_indices = @transform_4, window_bounds = array<i64: 1, 256>}, {pipeline_mode = #tpu.pipeline_mode<synchronous>, transform_indices = @transform_5, window_bounds = array<i64: 1, 256>}, {pipeline_mode = #tpu.pipeline_mode<synchronous>, transform_indices = @transform_6, window_bounds = array<i64: 256, 256>}, {pipeline_mode = #tpu.pipeline_mode<synchronous>, transform_indices = @transform_7, window_bounds = array<i64: 1, 256>}, {pipeline_mode = #tpu.pipeline_mode<synchronous>, transform_indices = @transform_8, window_bounds = array<i64: 1, 128>}, {pipeline_mode = #tpu.pipeline_mode<synchronous>, transform_indices = @transform_9, window_bounds = array<i64: 1, 128>}, {pipeline_mode = #tpu.pipeline_mode<synchronous>, transform_indices = @transform_10, window_bounds = array<i64: 128, 16>}, {pipeline_mode = #tpu.pipeline_mode<synchronous>, transform_indices = @transform_11, window_bounds = array<i64: 1, 16>}, {transform_indices = @transform_12, window_bounds = array<i64: 8, 9>}]} {
    %c0 = arith.constant 0 : index
    %c0_0 = arith.constant 0 : index
    %0 = vector.load %arg1[%c0, %c0_0] : memref<8x16xf32, #tpu.memory_space<vmem>>, vector<8x16xf32>
    %c0_1 = arith.constant 0 : index
    %c0_2 = arith.constant 0 : index
    %1 = vector.load %arg3[%c0_1, %c0_2] : memref<16x256xf32, #tpu.memory_space<vmem>>, vector<16x256xf32>
    %cst = arith.constant dense<0.000000e+00> : vector<8x256xf32>
    %2 = tpu.matmul %0, %1, %cst {dimension_numbers = #tpu.dot_dimension_numbers<[1], [0], [0], [1], [0, 0, 1, 1], [], []>} : vector<8x16xf32>, vector<16x256xf32>, vector<8x256xf32> -> vector<8x256xf32>
    %c0_3 = arith.constant 0 : index
    %c0_4 = arith.constant 0 : index
    %3 = vector.load %arg4[%c0_3, %c0_4] : memref<1x256xf32, #tpu.memory_space<vmem>>, vector<1x256xf32>
    %4 = vector.broadcast %3 : vector<1x256xf32> to vector<8x256xf32>
    %5 = arith.addf %2, %4 : vector<8x256xf32>
    %c0_5 = arith.constant 0 : index
    %c0_6 = arith.constant 0 : index
    %6 = vector.load %arg5[%c0_5, %c0_6] : memref<1x256xf32, #tpu.memory_space<vmem>>, vector<1x256xf32>
    %c0_7 = arith.constant 0 : index
    %c0_8 = arith.constant 0 : index
    %7 = vector.load %arg6[%c0_7, %c0_8] : memref<1x256xf32, #tpu.memory_space<vmem>>, vector<1x256xf32>
    %cst_9 = arith.constant dense<0.000000e+00> : vector<8xf32>
    %8 = vector.multi_reduction <add>, %5, %cst_9 [1] : vector<8x256xf32> to vector<8xf32>
    %9 = vector.shape_cast %8 : vector<8xf32> to vector<8x1xf32>
    %cst_10 = arith.constant 2.560000e+02 : f32
    %10 = vector.broadcast %cst_10 : f32 to vector<8x1xf32>
    %11 = arith.divf %9, %10 : vector<8x1xf32>
    %12 = arith.mulf %5, %5 : vector<8x256xf32>
    %cst_11 = arith.constant dense<0.000000e+00> : vector<8xf32>
    %13 = vector.multi_reduction <add>, %12, %cst_11 [1] : vector<8x256xf32> to vector<8xf32>
    %14 = vector.shape_cast %13 : vector<8xf32> to vector<8x1xf32>
    %cst_12 = arith.constant 2.560000e+02 : f32
    %15 = vector.broadcast %cst_12 : f32 to vector<8x1xf32>
    %16 = arith.divf %14, %15 : vector<8x1xf32>
    %17 = arith.mulf %11, %11 : vector<8x1xf32>
    %18 = arith.subf %16, %17 : vector<8x1xf32>
    %cst_13 = arith.constant 0.000000e+00 : f32
    %19 = vector.broadcast %cst_13 : f32 to vector<8x1xf32>
    %20 = arith.maximumf %18, %19 : vector<8x1xf32>
    %21 = vector.broadcast %11 : vector<8x1xf32> to vector<8x256xf32>
    %22 = arith.subf %5, %21 : vector<8x256xf32>
    %cst_14 = arith.constant 9.99999974E-6 : f32
    %23 = vector.broadcast %cst_14 : f32 to vector<8x1xf32>
    %24 = arith.addf %20, %23 : vector<8x1xf32>
    %25 = math.rsqrt %24 : vector<8x1xf32>
    %26 = vector.broadcast %25 : vector<8x1xf32> to vector<8x256xf32>
    %27 = arith.mulf %22, %26 : vector<8x256xf32>
    %28 = vector.broadcast %6 : vector<1x256xf32> to vector<8x256xf32>
    %29 = arith.mulf %27, %28 : vector<8x256xf32>
    %30 = vector.broadcast %7 : vector<1x256xf32> to vector<8x256xf32>
    %31 = arith.addf %29, %30 : vector<8x256xf32>
    %cst_15 = arith.constant 0.000000e+00 : f32
    %32 = vector.broadcast %cst_15 : f32 to vector<8x256xf32>
    %33 = arith.maximumf %31, %32 : vector<8x256xf32>
    %c0_16 = arith.constant 0 : index
    %c0_17 = arith.constant 0 : index
    %34 = vector.load %arg7[%c0_16, %c0_17] : memref<256x256xf32, #tpu.memory_space<vmem>>, vector<256x256xf32>
    %cst_18 = arith.constant dense<0.000000e+00> : vector<8x256xf32>
    %35 = tpu.matmul %33, %34, %cst_18 {dimension_numbers = #tpu.dot_dimension_numbers<[1], [0], [0], [1], [0, 0, 1, 1], [], []>} : vector<8x256xf32>, vector<256x256xf32>, vector<8x256xf32> -> vector<8x256xf32>
    %c0_19 = arith.constant 0 : index
    %c0_20 = arith.constant 0 : index
    %36 = vector.load %arg8[%c0_19, %c0_20] : memref<1x256xf32, #tpu.memory_space<vmem>>, vector<1x256xf32>
    %37 = vector.broadcast %36 : vector<1x256xf32> to vector<8x256xf32>
    %38 = arith.addf %35, %37 : vector<8x256xf32>
    %39 = vector.extract_strided_slice %38 {offsets = [0, 0], sizes = [8, 128], strides = [1, 1]} : vector<8x256xf32> to vector<8x128xf32>
    %c0_21 = arith.constant 0 : index
    %c0_22 = arith.constant 0 : index
    %40 = vector.load %arg9[%c0_21, %c0_22] : memref<1x128xf32, #tpu.memory_space<vmem>>, vector<1x128xf32>
    %c0_23 = arith.constant 0 : index
    %c0_24 = arith.constant 0 : index
    %41 = vector.load %arg10[%c0_23, %c0_24] : memref<1x128xf32, #tpu.memory_space<vmem>>, vector<1x128xf32>
    %cst_25 = arith.constant dense<0.000000e+00> : vector<8xf32>
    %42 = vector.multi_reduction <add>, %39, %cst_25 [1] : vector<8x128xf32> to vector<8xf32>
    %43 = vector.shape_cast %42 : vector<8xf32> to vector<8x1xf32>
    %cst_26 = arith.constant 1.280000e+02 : f32
    %44 = vector.broadcast %cst_26 : f32 to vector<8x1xf32>
    %45 = arith.divf %43, %44 : vector<8x1xf32>
    %46 = arith.mulf %39, %39 : vector<8x128xf32>
    %cst_27 = arith.constant dense<0.000000e+00> : vector<8xf32>
    %47 = vector.multi_reduction <add>, %46, %cst_27 [1] : vector<8x128xf32> to vector<8xf32>
    %48 = vector.shape_cast %47 : vector<8xf32> to vector<8x1xf32>
    %cst_28 = arith.constant 1.280000e+02 : f32
    %49 = vector.broadcast %cst_28 : f32 to vector<8x1xf32>
    %50 = arith.divf %48, %49 : vector<8x1xf32>
    %51 = arith.mulf %45, %45 : vector<8x1xf32>
    %52 = arith.subf %50, %51 : vector<8x1xf32>
    %cst_29 = arith.constant 0.000000e+00 : f32
    %53 = vector.broadcast %cst_29 : f32 to vector<8x1xf32>
    %54 = arith.maximumf %52, %53 : vector<8x1xf32>
    %55 = vector.broadcast %45 : vector<8x1xf32> to vector<8x128xf32>
    %56 = arith.subf %39, %55 : vector<8x128xf32>
    %cst_30 = arith.constant 9.99999974E-6 : f32
    %57 = vector.broadcast %cst_30 : f32 to vector<8x1xf32>
    %58 = arith.addf %54, %57 : vector<8x1xf32>
    %59 = math.rsqrt %58 : vector<8x1xf32>
    %60 = vector.broadcast %59 : vector<8x1xf32> to vector<8x128xf32>
    %61 = arith.mulf %56, %60 : vector<8x128xf32>
    %62 = vector.broadcast %40 : vector<1x128xf32> to vector<8x128xf32>
    %63 = arith.mulf %61, %62 : vector<8x128xf32>
    %64 = vector.broadcast %41 : vector<1x128xf32> to vector<8x128xf32>
    %65 = arith.addf %63, %64 : vector<8x128xf32>
    %cst_31 = arith.constant 0.000000e+00 : f32
    %66 = vector.broadcast %cst_31 : f32 to vector<8x128xf32>
    %67 = arith.maximumf %65, %66 : vector<8x128xf32>
    %68 = vector.extract_strided_slice %38 {offsets = [0, 128], sizes = [8, 128], strides = [1, 1]} : vector<8x256xf32> to vector<8x128xf32>
    %69 = arith.addf %67, %68 : vector<8x128xf32>
    %c0_32 = arith.constant 0 : index
    %c0_33 = arith.constant 0 : index
    %70 = vector.load %arg11[%c0_32, %c0_33] : memref<128x16xf32, #tpu.memory_space<vmem>>, vector<128x16xf32>
    %cst_34 = arith.constant dense<0.000000e+00> : vector<8x16xf32>
    %71 = tpu.matmul %69, %70, %cst_34 {dimension_numbers = #tpu.dot_dimension_numbers<[1], [0], [0], [1], [0, 0, 1, 1], [], []>} : vector<8x128xf32>, vector<128x16xf32>, vector<8x16xf32> -> vector<8x16xf32>
    %c0_35 = arith.constant 0 : index
    %c0_36 = arith.constant 0 : index
    %72 = vector.load %arg12[%c0_35, %c0_36] : memref<1x16xf32, #tpu.memory_space<vmem>>, vector<1x16xf32>
    %73 = vector.broadcast %72 : vector<1x16xf32> to vector<8x16xf32>
    %74 = arith.addf %71, %73 : vector<8x16xf32>
    %75 = vector.extract_strided_slice %74 {offsets = [0, 0], sizes = [8, 8], strides = [1, 1]} : vector<8x16xf32> to vector<8x8xf32>
    %76 = vector.extract_strided_slice %74 {offsets = [0, 8], sizes = [8, 8], strides = [1, 1]} : vector<8x16xf32> to vector<8x8xf32>
    %cst_37 = arith.constant -2.000000e+01 : f32
    %cst_38 = arith.constant 2.000000e+00 : f32
    %77 = vector.broadcast %cst_37 : f32 to vector<8x8xf32>
    %78 = arith.maximumf %77, %76 : vector<8x8xf32>
    %79 = vector.broadcast %cst_38 : f32 to vector<8x8xf32>
    %80 = arith.minimumf %79, %78 : vector<8x8xf32>
    %81 = math.exp %80 : vector<8x8xf32>
    %c0_39 = arith.constant 0 : index
    %c0_40 = arith.constant 0 : index
    %82 = vector.load %arg2[%c0_39, %c0_40] : memref<8x8xf32, #tpu.memory_space<vmem>>, vector<8x8xf32>
    %83 = arith.mulf %81, %82 : vector<8x8xf32>
    %84 = arith.addf %75, %83 : vector<8x8xf32>
    %cst_41 = arith.constant -5.000000e-01 : f32
    %85 = vector.broadcast %cst_41 : f32 to vector<8x8xf32>
    %86 = arith.mulf %85, %82 : vector<8x8xf32>
    %87 = arith.mulf %86, %82 : vector<8x8xf32>
    %88 = arith.subf %87, %80 : vector<8x8xf32>
    %cst_42 = arith.constant 0.918938517 : f32
    %89 = vector.broadcast %cst_42 : f32 to vector<8x8xf32>
    %90 = arith.subf %88, %89 : vector<8x8xf32>
    %cst_43 = arith.constant dense<0.000000e+00> : vector<8xf32>
    %91 = vector.multi_reduction <add>, %90, %cst_43 [1] : vector<8x8xf32> to vector<8xf32>
    %92 = vector.shape_cast %91 : vector<8xf32> to vector<8x1xf32>
    %93 = tpu.concatenate %84, %92 in 1 : vector<8x8xf32>, vector<8x1xf32> -> vector<8x9xf32>
    %c0_44 = arith.constant 0 : index
    %c0_45 = arith.constant 0 : index
    %94 = vector.load %arg13[%c0_44, %c0_45] : memref<8x9xf32, #tpu.memory_space<vmem>>, vector<8x9xf32>
    tpu.vector_store %arg13[%c0_44, %c0_45], %93 {strides = array<i32>} : memref<8x9xf32, #tpu.memory_space<vmem>>, vector<8x9xf32>,
    return
  }
  func.func @transform_0(%arg0: i32) -> (i32, i32) {
    %c0_i32 = arith.constant 0 : i32
    %c0_i32_0 = arith.constant 0 : i32
    return %arg0, %c0_i32 : i32, i32
  }
  func.func @transform_1(%arg0: i32) -> (i32, i32) {
    %c0_i32 = arith.constant 0 : i32
    %c0_i32_0 = arith.constant 0 : i32
    return %arg0, %c0_i32 : i32, i32
  }
  func.func @transform_2(%arg0: i32) -> (i32, i32) {
    %c0_i32 = arith.constant 0 : i32
    %c0_i32_0 = arith.constant 0 : i32
    %c0_i32_1 = arith.constant 0 : i32
    return %c0_i32, %c0_i32_0 : i32, i32
  }
  func.func @transform_3(%arg0: i32) -> (i32, i32) {
    %c0_i32 = arith.constant 0 : i32
    %c0_i32_0 = arith.constant 0 : i32
    %c0_i32_1 = arith.constant 0 : i32
    return %c0_i32, %c0_i32_0 : i32, i32
  }
  func.func @transform_4(%arg0: i32) -> (i32, i32) {
    %c0_i32 = arith.constant 0 : i32
    %c0_i32_0 = arith.constant 0 : i32
    %c0_i32_1 = arith.constant 0 : i32
    return %c0_i32, %c0_i32_0 : i32, i32
  }
  func.func @transform_5(%arg0: i32) -> (i32, i32) {
    %c0_i32 = arith.constant 0 : i32
    %c0_i32_0 = arith.constant 0 : i32
    %c0_i32_1 = arith.constant 0 : i32
    return %c0_i32, %c0_i32_0 : i32, i32
  }
  func.func @transform_6(%arg0: i32) -> (i32, i32) {
    %c0_i32 = arith.constant 0 : i32
    %c0_i32_0 = arith.constant 0 : i32
    %c0_i32_1 = arith.constant 0 : i32
    return %c0_i32, %c0_i32_0 : i32, i32
  }
  func.func @transform_7(%arg0: i32) -> (i32, i32) {
    %c0_i32 = arith.constant 0 : i32
    %c0_i32_0 = arith.constant 0 : i32
    %c0_i32_1 = arith.constant 0 : i32
    return %c0_i32, %c0_i32_0 : i32, i32
  }
  func.func @transform_8(%arg0: i32) -> (i32, i32) {
    %c0_i32 = arith.constant 0 : i32
    %c0_i32_0 = arith.constant 0 : i32
    %c0_i32_1 = arith.constant 0 : i32
    return %c0_i32, %c0_i32_0 : i32, i32
  }
  func.func @transform_9(%arg0: i32) -> (i32, i32) {
    %c0_i32 = arith.constant 0 : i32
    %c0_i32_0 = arith.constant 0 : i32
    %c0_i32_1 = arith.constant 0 : i32
    return %c0_i32, %c0_i32_0 : i32, i32
  }
  func.func @transform_10(%arg0: i32) -> (i32, i32) {
    %c0_i32 = arith.constant 0 : i32
    %c0_i32_0 = arith.constant 0 : i32
    %c0_i32_1 = arith.constant 0 : i32
    return %c0_i32, %c0_i32_0 : i32, i32
  }
  func.func @transform_11(%arg0: i32) -> (i32, i32) {
    %c0_i32 = arith.constant 0 : i32
    %c0_i32_0 = arith.constant 0 : i32
    %c0_i32_1 = arith.constant 0 : i32
    return %c0_i32, %c0_i32_0 : i32, i32
  }
  func.func @transform_12(%arg0: i32) -> (i32, i32) {
    %c0_i32 = arith.constant 0 : i32
    %c0_i32_0 = arith.constant 0 : i32
    return %arg0, %c0_i32 : i32, i32
  }
}

</mosaic_0001>

<llo_original>
// kernel: actor_forward.1
$region0: #{actor_forward.1}
  #allocation0 [shape = 'u32[]', space=smem, size = 0x4, offset = 0x4, fixed_abs, tag = 'smem constant byte address 0x4 - core index']
  #allocation1 [shape = 'u32[144,128]{1,0:T(1,128)}', space=vmem, size = 0x12000, scoped, tag = 'internal scratch']
  %s0 = inlined_call_operand.vmem [shape: f32[8,16], index: 0, kind: input, shape index: {}]
  %s1 = inlined_call_operand.vmem [shape: f32[8,8], index: 1, kind: input, shape index: {}]
  %s2 = inlined_call_operand.vmem [shape: f32[16,256], index: 2, kind: input, shape index: {}]
  %s3 = inlined_call_operand.vmem [shape: f32[1,256], index: 3, kind: input, shape index: {}]
  %s4 = inlined_call_operand.vmem [shape: f32[1,256], index: 4, kind: input, shape index: {}]
  %s5 = inlined_call_operand.vmem [shape: f32[1,256], index: 5, kind: input, shape index: {}]
  %s6 = inlined_call_operand.vmem [shape: f32[256,256], index: 6, kind: input, shape index: {}]
  %s7 = inlined_call_operand.vmem [shape: f32[1,256], index: 7, kind: input, shape index: {}]
  %s8 = inlined_call_operand.vmem [shape: f32[1,128], index: 8, kind: input, shape index: {}]
  %s9 = inlined_call_operand.vmem [shape: f32[1,128], index: 9, kind: input, shape index: {}]
  %s10 = inlined_call_operand.vmem [shape: f32[128,16], index: 10, kind: input, shape index: {}]
  %s11 = inlined_call_operand.vmem [shape: f32[1,16], index: 11, kind: input, shape index: {}]
  %s12 = inlined_call_operand.vmem [shape: f32[8,9], index: 12, kind: output, shape index: {}]
  %s13 = sld [smem:[#allocation0]]
  $region58: #{actor_forward.1} parent=0
    _
  %s15 = ssub.s32 1, %s13
  %s16 = scalar_select 0, %s15, %s13
  // Predicated region
  $region2: #{actor_forward.1} parent=0 // pred_check
    _
  $region3: #{actor_forward.1} parent=0 // pred_check_branch
    %18 = sbr.rel (0) target = $region5
  $region4: #{actor_forward.1} parent=0 // pred_region
    _
  $region5: #{actor_forward.1} parent=0 // pred_fallthru
    _
  // Predicated region
  $region6: #{actor_forward.1} parent=0 // pred_check
    _
  $region7: #{actor_forward.1} parent=0 // pred_check_branch
    %20 = sbr.rel (0) target = $region9
  $region8: #{actor_forward.1} parent=0 // pred_region
    _
  $region9: #{actor_forward.1} parent=0 // pred_fallthru
    _
  // Predicated region
  $region10: #{actor_forward.1} parent=0 // pred_check
    _
  $region11: #{actor_forward.1} parent=0 // pred_check_branch
    %22 = sbr.rel (0) target = $region13
  $region12: #{actor_forward.1} parent=0 // pred_region
    _
  $region13: #{actor_forward.1} parent=0 // pred_fallthru
    _
  // Predicated region
  $region14: #{actor_forward.1} parent=0 // pred_check
    _
  $region15: #{actor_forward.1} parent=0 // pred_check_branch
    %24 = sbr.rel (0) target = $region17
  $region16: #{actor_forward.1} parent=0 // pred_region
    _
  $region17: #{actor_forward.1} parent=0 // pred_fallthru
    _
  // Predicated region
  $region18: #{actor_forward.1} parent=0 // pred_check
    _
  $region19: #{actor_forward.1} parent=0 // pred_check_branch
    %26 = sbr.rel (0) target = $region21
  $region20: #{actor_forward.1} parent=0 // pred_region
    _
  $region21: #{actor_forward.1} parent=0 // pred_fallthru
    _
  // Predicated region
  $region22: #{actor_forward.1} parent=0 // pred_check
    _
  $region23: #{actor_forward.1} parent=0 // pred_check_branch
    %28 = sbr.rel (0) target = $region25
  $region24: #{actor_forward.1} parent=0 // pred_region
    _
  $region25: #{actor_forward.1} parent=0 // pred_fallthru
    _
  // Predicated region
  $region26: #{actor_forward.1} parent=0 // pred_check
    _
  $region27: #{actor_forward.1} parent=0 // pred_check_branch
    %30 = sbr.rel (0) target = $region29
  $region28: #{actor_forward.1} parent=0 // pred_region
    _
  $region29: #{actor_forward.1} parent=0 // pred_fallthru
    _
  // Predicated region
  $region30: #{actor_forward.1} parent=0 // pred_check
    _
  $region31: #{actor_forward.1} parent=0 // pred_check_branch
    %32 = sbr.rel (0) target = $region33
  $region32: #{actor_forward.1} parent=0 // pred_region
    _
  $region33: #{actor_forward.1} parent=0 // pred_fallthru
    _
  // Predicated region
  $region34: #{actor_forward.1} parent=0 // pred_check
    _
  $region35: #{actor_forward.1} parent=0 // pred_check_branch
    %34 = sbr.rel (0) target = $region37
  $region36: #{actor_forward.1} parent=0 // pred_region
    _
  $region37: #{actor_forward.1} parent=0 // pred_fallthru
    _
  // Predicated region
  $region38: #{actor_forward.1} parent=0 // pred_check
    _
  $region39: #{actor_forward.1} parent=0 // pred_check_branch
    %36 = sbr.rel (0) target = $region41
  $region40: #{actor_forward.1} parent=0 // pred_region
    _
  $region41: #{actor_forward.1} parent=0 // pred_fallthru
    _
  // Predicated region
  $region42: #{actor_forward.1} parent=0 // pred_check
    _
  $region43: #{actor_forward.1} parent=0 // pred_check_branch
    %38 = sbr.rel (0) target = $region45
  $region44: #{actor_forward.1} parent=0 // pred_region
    _
  $region45: #{actor_forward.1} parent=0 // pred_fallthru
    _
  // Predicated region
  $region46: #{actor_forward.1} parent=0 // pred_check
    _
  $region47: #{actor_forward.1} parent=0 // pred_check_branch
    %40 = sbr.rel (0) target = $region49
  $region48: #{actor_forward.1} parent=0 // pred_region
    _
  $region49: #{actor_forward.1} parent=0 // pred_fallthru
    _
  %v41 = vld [vmem:[%s0] sm:$0xff]
  %v42 = vld [vmem:[%s2] sm:$0xff]
  %v43 = vld [vmem:[%s2 + $0x8] sm:$0xff]
  %v44 = vld [vmem:[%s2 + $0x10] sm:$0xff]
  %v45 = vld [vmem:[%s2 + $0x18] sm:$0xff]
  %v46 = vld [vmem:[%s3] sm:$0x3]
  %v48 = vlaneseq
  %v49 = vshrl.u32 %v48, 7
  %v50 = vsub.s32 0, %v49
  %v51 = vrot.slane %v46, %v50
  %v52 = vlaneseq
  %v53 = vshrl.u32 %v52, 7
  %v54 = vsub.s32 1, %v53
  %v55 = vrot.slane %v46, %v54
  %vm58 = vcmask 130048
  %v60 = vsel %vm58, %v41, 0
  %62 = vmatprep.subr.mxu0 0.0
  %63 = vmatpush1.msra.mxu0 0.0
  %64 = vmatprep.subr.mxu0 0.0
  %65 = vmatpush1.msra.mxu0 0.0
  %66 = vmatprep.subr.mxu0 0.0
  %67 = vmatpush1.msra.mxu0 0.0
  %68 = vmatprep.subr.mxu0 0.0
  %69 = vmatpush1.msra.mxu0 0.0
  %70 = vmatprep.subr.mxu0 0.0
  %71 = vmatpush1.msra.mxu0 0.0
  %72 = vmatprep.subr.mxu0 0.0
  %73 = vmatpush1.msra.mxu0 0.0
  %74 = vmatprep.subr.mxu0 0.0
  %75 = vmatpush1.msra.mxu0 0.0
  %76 = vmatprep.subr.mxu0 0.0
  %77 = vmatpush1.msra.mxu0 0.0
  %78 = vmatprep.subr.mxu0 0.0
  %79 = vmatpush1.msra.mxu0 0.0
  %80 = vmatprep.subr.mxu0 0.0
  %81 = vmatpush1.msra.mxu0 0.0
  %82 = vmatprep.subr.mxu0 0.0
  %83 = vmatpush1.msra.mxu0 0.0
  %84 = vmatprep.subr.mxu0 0.0
  %85 = vmatpush1.msra.mxu0 0.0
  %86 = vmatprep.subr.mxu0 0.0
  %87 = vmatpush1.msra.mxu0 0.0
  %88 = vmatprep.subr.mxu0 0.0
  %89 = vmatpush1.msra.mxu0 0.0
  %90 = vmatprep.subr.mxu0 %v45
  %91 = vmatpush1.msra.mxu0 %v44
  %92 = vmatprep.subr.mxu0 %v43
  %93 = vmatpush1.msra.mxu0 %v42
  %94 = vmatprep.subr.mxu0 0.0
  %95 = vmatpush2.msra.mxu0 0.0
  %96 = vmatprep.subr.mxu0 0.0
  %97 = vmatpush2.msra.mxu0 0.0
  %98 = vmatprep.subr.mxu0 0.0
  %99 = vmatpush2.msra.mxu0 0.0
  %100 = vmatprep.subr.mxu0 0.0
  %101 = vmatpush2.msra.mxu0 0.0
  %102 = vmatprep.subr.mxu0 0.0
  %103 = vmatpush2.msra.mxu0 0.0
  %104 = vmatprep.subr.mxu0 0.0
  %105 = vmatpush2.msra.mxu0 0.0
  %106 = vmatprep.subr.mxu0 0.0
  %107 = vmatpush2.msra.mxu0 0.0
  %108 = vmatprep.subr.mxu0 0.0
  %109 = vmatpush2.msra.mxu0 0.0
  %110 = vmatprep.subr.mxu0 0.0
  %111 = vmatpush2.msra.mxu0 0.0
  %112 = vmatprep.subr.mxu0 0.0
  %113 = vmatpush2.msra.mxu0 0.0
  %114 = vmatprep.subr.mxu0 0.0
  %115 = vmatpush2.msra.mxu0 0.0
  %116 = vmatprep.subr.mxu0 0.0
  %117 = vmatpush2.msra.mxu0 0.0
  %118 = vmatprep.subr.mxu0 0.0
  %119 = vmatpush2.msra.mxu0 0.0
  %120 = vmatprep.subr.mxu0 0.0
  %121 = vmatpush2.msra.mxu0 0.0
  %122 = vmatprep.subr.mxu0 0.0
  %123 = vmatpush2.msra.mxu0 0.0
  %124 = vmatprep.subr.mxu0 0.0
  %125 = vmatpush2.msra.mxu0 0.0
  %126 = vmatprep.mubr.f32.mxu0 0.0
  %127 = vmatmul.mubr.f32.gmra.mxu0 %v60
  %v128 = vpop.f32.mrf.mxu0
  %v129 = vadd.f32 %v51, %v128
  %v130 = vpop.f32.mrf.mxu0
  %v131 = vadd.f32 %v55, %v130
  %132 = vdwg.mxu0
  %v133 = vld [vmem:[%s4] sm:$0x3]
  %v134 = vld [vmem:[%s5] sm:$0x3]
  %v135 = vadd.f32 %v129, %v131
  %136 = vadd.xlane.f32.xlu0 %v135
  %v137 = vpop.xlane.xlu0 %136
  %v138 = vrcp.pop 256.0
  %v139 = vmul.f32 %v137, %v138
  %v140 = vmul.f32 %v129, %v129
  %v141 = vmul.f32 %v131, %v131
  %v142 = vadd.f32 %v140, %v141
  %143 = vadd.xlane.f32.xlu0 %v142
  %v144 = vpop.xlane.xlu0 %143
  %v145 = vmul.f32 %v144, %v138
  %v146 = vmul.f32 %v139, %v139
  %v147 = vsub.f32 %v145, %v146
  %v148 = vmax.f32 %v147, 0.0
  %v149 = vsub.f32 %v129, %v139
  %v150 = vsub.f32 %v131, %v139
  %v151 = vadd.f32 %v148, 1e-05
  %v152 = vrsqrt.pop %v151
  %v153 = vmul.f32 %v149, %v152
  %v154 = vmul.f32 %v150, %v152
  %v156 = vlaneseq
  %v157 = vshrl.u32 %v156, 7
  %v158 = vsub.s32 0, %v157
  %v159 = vrot.slane %v133, %v158
  %v160 = vlaneseq
  %v161 = vshrl.u32 %v160, 7
  %v162 = vsub.s32 1, %v161
  %v163 = vrot.slane %v133, %v162
  %v166 = vmul.f32 %v153, %v159
  %v167 = vmul.f32 %v154, %v163
  %v169 = vlaneseq
  %v170 = vshrl.u32 %v169, 7
  %v171 = vsub.s32 0, %v170
  %v172 = vrot.slane %v134, %v171
  %v173 = vlaneseq
  %v174 = vshrl.u32 %v173, 7
  %v175 = vsub.s32 1, %v174
  %v176 = vrot.slane %v134, %v175
  %v179 = vadd.f32 %v166, %v172
  %v180 = vadd.f32 %v167, %v176
  %v181 = vmax.f32 %v179, 0.0
  %v182 = vmax.f32 %v180, 0.0
  %v183 = vld [vmem:[%s6] sm:$0xff]
  %v184 = vld [vmem:[%s6 + $0x8] sm:$0xff]
  %v185 = vld [vmem:[%s6 + $0x10] sm:$0xff]
  %v186 = vld [vmem:[%s6 + $0x18] sm:$0xff]
  %v187 = vld [vmem:[%s6 + $0x20] sm:$0xff]
  %v188 = vld [vmem:[%s6 + $0x28] sm:$0xff]
  %v189 = vld [vmem:[%s6 + $0x30] sm:$0xff]
  %v190 = vld [vmem:[%s6 + $0x38] sm:$0xff]
  %v191 = vld [vmem:[%s6 + $0x40] sm:$0xff]
  %v192 = vld [vmem:[%s6 + $0x48] sm:$0xff]
  %v193 = vld [vmem:[%s6 + $0x50] sm:$0xff]
  %v194 = vld [vmem:[%s6 + $0x58] sm:$0xff]
  %v195 = vld [vmem:[%s6 + $0x60] sm:$0xff]
  %v196 = vld [vmem:[%s6 + $0x68] sm:$0xff]
  %v197 = vld [vmem:[%s6 + $0x70] sm:$0xff]
  %v198 = vld [vmem:[%s6 + $0x78] sm:$0xff]
  %v199 = vld [vmem:[%s6 + $0x80] sm:$0xff]
  %v200 = vld [vmem:[%s6 + $0x88] sm:$0xff]
  %v201 = vld [vmem:[%s6 + $0x90] sm:$0xff]
  %v202 = vld [vmem:[%s6 + $0x98] sm:$0xff]
  %v203 = vld [vmem:[%s6 + $0xa0] sm:$0xff]
  %v204 = vld [vmem:[%s6 + $0xa8] sm:$0xff]
  %v205 = vld [vmem:[%s6 + $0xb0] sm:$0xff]
  %v206 = vld [vmem:[%s6 + $0xb8] sm:$0xff]
  %v207 = vld [vmem:[%s6 + $0xc0] sm:$0xff]
  %v208 = vld [vmem:[%s6 + $0xc8] sm:$0xff]
  %v209 = vld [vmem:[%s6 + $0xd0] sm:$0xff]
  %v210 = vld [vmem:[%s6 + $0xd8] sm:$0xff]
  %v211 = vld [vmem:[%s6 + $0xe0] sm:$0xff]
  %v212 = vld [vmem:[%s6 + $0xe8] sm:$0xff]
  %v213 = vld [vmem:[%s6 + $0xf0] sm:$0xff]
  %v214 = vld [vmem:[%s6 + $0xf8] sm:$0xff]
  %v215 = vld [vmem:[%s6 + $0x100] sm:$0xff]
  %v216 = vld [vmem:[%s6 + $0x108] sm:$0xff]
  %v217 = vld [vmem:[%s6 + $0x110] sm:$0xff]
  %v218 = vld [vmem:[%s6 + $0x118] sm:$0xff]
  %v219 = vld [vmem:[%s6 + $0x120] sm:$0xff]
  %v220 = vld [vmem:[%s6 + $0x128] sm:$0xff]
  %v221 = vld [vmem:[%s6 + $0x130] sm:$0xff]
  %v222 = vld [vmem:[%s6 + $0x138] sm:$0xff]
  %v223 = vld [vmem:[%s6 + $0x140] sm:$0xff]
  %v224 = vld [vmem:[%s6 + $0x148] sm:$0xff]
  %v225 = vld [vmem:[%s6 + $0x150] sm:$0xff]
  %v226 = vld [vmem:[%s6 + $0x158] sm:$0xff]
  %v227 = vld [vmem:[%s6 + $0x160] sm:$0xff]
  %v228 = vld [vmem:[%s6 + $0x168] sm:$0xff]
  %v229 = vld [vmem:[%s6 + $0x170] sm:$0xff]
  %v230 = vld [vmem:[%s6 + $0x178] sm:$0xff]
  %v231 = vld [vmem:[%s6 + $0x180] sm:$0xff]
  %v232 = vld [vmem:[%s6 + $0x188] sm:$0xff]
  %v233 = vld [vmem:[%s6 + $0x190] sm:$0xff]
  %v234 = vld [vmem:[%s6 + $0x198] sm:$0xff]
  %v235 = vld [vmem:[%s6 + $0x1a0] sm:$0xff]
  %v236 = vld [vmem:[%s6 + $0x1a8] sm:$0xff]
  %v237 = vld [vmem:[%s6 + $0x1b0] sm:$0xff]
  %v238 = vld [vmem:[%s6 + $0x1b8] sm:$0xff]
  %v239 = vld [vmem:[%s6 + $0x1c0] sm:$0xff]
  %v240 = vld [vmem:[%s6 + $0x1c8] sm:$0xff]
  %v241 = vld [vmem:[%s6 + $0x1d0] sm:$0xff]
  %v242 = vld [vmem:[%s6 + $0x1d8] sm:$0xff]
  %v243 = vld [vmem:[%s6 + $0x1e0] sm:$0xff]
  %v244 = vld [vmem:[%s6 + $0x1e8] sm:$0xff]
  %v245 = vld [vmem:[%s6 + $0x1f0] sm:$0xff]
  %v246 = vld [vmem:[%s6 + $0x1f8] sm:$0xff]
  %v247 = vld [vmem:[%s7] sm:$0x3]
  %v249 = vlaneseq
  %v250 = vshrl.u32 %v249, 7
  %v251 = vsub.s32 0, %v250
  %v252 = vrot.slane %v247, %v251
  %v253 = vlaneseq
  %v254 = vshrl.u32 %v253, 7
  %v255 = vsub.s32 1, %v254
  %v256 = vrot.slane %v247, %v255
  %259 = vmatprep.subr.mxu0 %v214
  %260 = vmatpush1.msra.mxu0 %v213
  %261 = vmatprep.subr.mxu0 %v212
  %262 = vmatpush1.msra.mxu0 %v211
  %263 = vmatprep.subr.mxu0 %v210
  %264 = vmatpush1.msra.mxu0 %v209
  %265 = vmatprep.subr.mxu0 %v208
  %266 = vmatpush1.msra.mxu0 %v207
  %267 = vmatprep.subr.mxu0 %v206
  %268 = vmatpush1.msra.mxu0 %v205
  %269 = vmatprep.subr.mxu0 %v204
  %270 = vmatpush1.msra.mxu0 %v203
  %271 = vmatprep.subr.mxu0 %v202
  %272 = vmatpush1.msra.mxu0 %v201
  %273 = vmatprep.subr.mxu0 %v200
  %274 = vmatpush1.msra.mxu0 %v199
  %275 = vmatprep.subr.mxu0 %v198
  %276 = vmatpush1.msra.mxu0 %v197
  %277 = vmatprep.subr.mxu0 %v196
  %278 = vmatpush1.msra.mxu0 %v195
  %279 = vmatprep.subr.mxu0 %v194
  %280 = vmatpush1.msra.mxu0 %v193
  %281 = vmatprep.subr.mxu0 %v192
  %282 = vmatpush1.msra.mxu0 %v191
  %283 = vmatprep.subr.mxu0 %v190
  %284 = vmatpush1.msra.mxu0 %v189
  %285 = vmatprep.subr.mxu0 %v188
  %286 = vmatpush1.msra.mxu0 %v187
  %287 = vmatprep.subr.mxu0 %v186
  %288 = vmatpush1.msra.mxu0 %v185
  %289 = vmatprep.subr.mxu0 %v184
  %290 = vmatpush1.msra.mxu0 %v183
  %291 = vmatprep.subr.mxu0 %v246
  %292 = vmatpush2.msra.mxu0 %v245
  %293 = vmatprep.subr.mxu0 %v244
  %294 = vmatpush2.msra.mxu0 %v243
  %295 = vmatprep.subr.mxu0 %v242
  %296 = vmatpush2.msra.mxu0 %v241
  %297 = vmatprep.subr.mxu0 %v240
  %298 = vmatpush2.msra.mxu0 %v239
  %299 = vmatprep.subr.mxu0 %v238
  %300 = vmatpush2.msra.mxu0 %v237
  %301 = vmatprep.subr.mxu0 %v236
  %302 = vmatpush2.msra.mxu0 %v235
  %303 = vmatprep.subr.mxu0 %v234
  %304 = vmatpush2.msra.mxu0 %v233
  %305 = vmatprep.subr.mxu0 %v232
  %306 = vmatpush2.msra.mxu0 %v231
  %307 = vmatprep.subr.mxu0 %v230
  %308 = vmatpush2.msra.mxu0 %v229
  %309 = vmatprep.subr.mxu0 %v228
  %310 = vmatpush2.msra.mxu0 %v227
  %311 = vmatprep.subr.mxu0 %v226
  %312 = vmatpush2.msra.mxu0 %v225
  %313 = vmatprep.subr.mxu0 %v224
  %314 = vmatpush2.msra.mxu0 %v223
  %315 = vmatprep.subr.mxu0 %v222
  %316 = vmatpush2.msra.mxu0 %v221
  %317 = vmatprep.subr.mxu0 %v220
  %318 = vmatpush2.msra.mxu0 %v219
  %319 = vmatprep.subr.mxu0 %v218
  %320 = vmatpush2.msra.mxu0 %v217
  %321 = vmatprep.subr.mxu0 %v216
  %322 = vmatpush2.msra.mxu0 %v215
  %323 = vmatprep.mubr.f32.mxu0 %v182
  %324 = vmatmul.mubr.f32.gmra.mxu0 %v181
  %v325 = vpop.f32.mrf.mxu0
  %v326 = vadd.f32 %v252, %v325
  %v327 = vpop.f32.mrf.mxu0
  %v328 = vadd.f32 %v256, %v327
  %329 = vdwg.mxu0
  %v330 = vld [vmem:[%s8] sm:$0x1]
  %v331 = vld [vmem:[%s9] sm:$0x1]
  %332 = vadd.xlane.f32.xlu0 %v326
  %v333 = vpop.xlane.xlu0 %332
  %v334 = vrcp.pop 128.0
  %v335 = vmul.f32 %v333, %v334
  %v336 = vmul.f32 %v326, %v326
  %337 = vadd.xlane.f32.xlu0 %v336
  %v338 = vpop.xlane.xlu0 %337
  %v339 = vmul.f32 %v338, %v334
  %v340 = vmul.f32 %v335, %v335
  %v341 = vsub.f32 %v339, %v340
  %v342 = vmax.f32 %v341, 0.0
  %v343 = vsub.f32 %v326, %v335
  %v344 = vadd.f32 %v342, 1e-05
  %v345 = vrsqrt.pop %v344
  %v346 = vmul.f32 %v343, %v345
  %v348 = vlaneseq
  %v349 = vshrl.u32 %v348, 7
  %v350 = vsub.s32 0, %v349
  %v351 = vrot.slane %v330, %v350
  %v353 = vmul.f32 %v346, %v351
  %v355 = vlaneseq
  %v356 = vshrl.u32 %v355, 7
  %v357 = vsub.s32 0, %v356
  %v358 = vrot.slane %v331, %v357
  %v360 = vadd.f32 %v353, %v358
  %v361 = vmax.f32 %v360, 0.0
  %v362 = vadd.f32 %v361, %v328
  %v363 = vld [vmem:[%s10] sm:$0xff]
  %v364 = vld [vmem:[%s10 + $0x8] sm:$0xff]
  %v365 = vld [vmem:[%s10 + $0x10] sm:$0xff]
  %v366 = vld [vmem:[%s10 + $0x18] sm:$0xff]
  %v367 = vld [vmem:[%s10 + $0x20] sm:$0xff]
  %v368 = vld [vmem:[%s10 + $0x28] sm:$0xff]
  %v369 = vld [vmem:[%s10 + $0x30] sm:$0xff]
  %v370 = vld [vmem:[%s10 + $0x38] sm:$0xff]
  %v371 = vld [vmem:[%s10 + $0x40] sm:$0xff]
  %v372 = vld [vmem:[%s10 + $0x48] sm:$0xff]
  %v373 = vld [vmem:[%s10 + $0x50] sm:$0xff]
  %v374 = vld [vmem:[%s10 + $0x58] sm:$0xff]
  %v375 = vld [vmem:[%s10 + $0x60] sm:$0xff]
  %v376 = vld [vmem:[%s10 + $0x68] sm:$0xff]
  %v377 = vld [vmem:[%s10 + $0x70] sm:$0xff]
  %v378 = vld [vmem:[%s10 + $0x78] sm:$0xff]
  %v379 = vld [vmem:[%s11] sm:$0x1]
  %v381 = vlaneseq
  %v382 = vshrl.u32 %v381, 7
  %v383 = vsub.s32 0, %v382
  %v384 = vrot.slane %v379, %v383
  %386 = vmatprep.subr.mxu0 0.0
  %387 = vmatpush1.msra.mxu0 %v378
  %388 = vmatprep.subr.mxu0 0.0
  %389 = vmatpush1.msra.mxu0 %v377
  %390 = vmatprep.subr.mxu0 0.0
  %391 = vmatpush1.msra.mxu0 %v376
  %392 = vmatprep.subr.mxu0 0.0
  %393 = vmatpush1.msra.mxu0 %v375
  %394 = vmatprep.subr.mxu0 0.0
  %395 = vmatpush1.msra.mxu0 %v374
  %396 = vmatprep.subr.mxu0 0.0
  %397 = vmatpush1.msra.mxu0 %v373
  %398 = vmatprep.subr.mxu0 0.0
  %399 = vmatpush1.msra.mxu0 %v372
  %400 = vmatprep.subr.mxu0 0.0
  %401 = vmatpush1.msra.mxu0 %v371
  %402 = vmatprep.subr.mxu0 0.0
  %403 = vmatpush1.msra.mxu0 %v370
  %404 = vmatprep.subr.mxu0 0.0
  %405 = vmatpush1.msra.mxu0 %v369
  %406 = vmatprep.subr.mxu0 0.0
  %407 = vmatpush1.msra.mxu0 %v368
  %408 = vmatprep.subr.mxu0 0.0
  %409 = vmatpush1.msra.mxu0 %v367
  %410 = vmatprep.subr.mxu0 0.0
  %411 = vmatpush1.msra.mxu0 %v366
  %412 = vmatprep.subr.mxu0 0.0
  %413 = vmatpush1.msra.mxu0 %v365
  %414 = vmatprep.subr.mxu0 0.0
  %415 = vmatpush1.msra.mxu0 %v364
  %416 = vmatprep.subr.mxu0 0.0
  %417 = vmatpush1.msra.mxu0 %v363
  %418 = vmatprep.subr.mxu0 0.0
  %419 = vmatpush2.msra.mxu0 0.0
  %420 = vmatprep.subr.mxu0 0.0
  %421 = vmatpush2.msra.mxu0 0.0
  %422 = vmatprep.subr.mxu0 0.0
  %423 = vmatpush2.msra.mxu0 0.0
  %424 = vmatprep.subr.mxu0 0.0
  %425 = vmatpush2.msra.mxu0 0.0
  %426 = vmatprep.subr.mxu0 0.0
  %427 = vmatpush2.msra.mxu0 0.0
  %428 = vmatprep.subr.mxu0 0.0
  %429 = vmatpush2.msra.mxu0 0.0
  %430 = vmatprep.subr.mxu0 0.0
  %431 = vmatpush2.msra.mxu0 0.0
  %432 = vmatprep.subr.mxu0 0.0
  %433 = vmatpush2.msra.mxu0 0.0
  %434 = vmatprep.subr.mxu0 0.0
  %435 = vmatpush2.msra.mxu0 0.0
  %436 = vmatprep.subr.mxu0 0.0
  %437 = vmatpush2.msra.mxu0 0.0
  %438 = vmatprep.subr.mxu0 0.0
  %439 = vmatpush2.msra.mxu0 0.0
  %440 = vmatprep.subr.mxu0 0.0
  %441 = vmatpush2.msra.mxu0 0.0
  %442 = vmatprep.subr.mxu0 0.0
  %443 = vmatpush2.msra.mxu0 0.0
  %444 = vmatprep.subr.mxu0 0.0
  %445 = vmatpush2.msra.mxu0 0.0
  %446 = vmatprep.subr.mxu0 0.0
  %447 = vmatpush2.msra.mxu0 0.0
  %448 = vmatprep.subr.mxu0 0.0
  %449 = vmatpush2.msra.mxu0 0.0
  %450 = vmatprep.mubr.f32.mxu0 0.0
  %451 = vmatmul.mubr.f32.gmra.mxu0 %v362
  %v452 = vpop.f32.mrf.mxu0
  %v453 = vadd.f32 %v384, %v452
  %v454 = vpop.f32.mrf.mxu0
  %455 = vdwg.mxu0
  %v456 = vmax.f32 %v453, -20.0
  %v457 = vmin.f32 %v456, 2.0
  %v458 = vmul.f32 %v457, 1.442695
  %v459 = vpow.pop %v458
  %v460 = vld [vmem:[%s1] sm:$0xff]
  %462 = vrot.lane.b32.xlu0 %v460, 8
  %v463 = vpop.permute.xlu0 %462
  %v465 = vmul.f32 %v459, %v463
  %467 = vrot.lane.b32.xlu0 %v465, 120
  %v468 = vpop.permute.xlu0 %467
  %v470 = vadd.f32 %v453, %v468
  %v471 = vmul.f32 %v460, -0.5
  %v472 = vmul.f32 %v471, %v460
  %474 = vrot.lane.b32.xlu0 %v457, 120
  %v475 = vpop.permute.xlu0 %474
  %v477 = vsub.f32 %v472, %v475
  %v478 = vsub.f32 %v477, 0.9189385
  %vm479 = vcmask 64512
  %v480 = vsel %vm479, %v478, 0.0
  %481 = vadd.xlane.f32.xlu0 %v480
  %v482 = vpop.xlane.xlu0 %481
  %v483 = vsel %vm479, %v470, %v482
  %vm484 = vcmask 72704
  %485 = vst.msk [vmem:[%s12] sm:$0xff] %vm484, %v483
  // Predicated region
  $region50: #{actor_forward.1} parent=0 // pred_check
    _
  $region51: #{actor_forward.1} parent=0 // pred_check_branch
    %487 = sbr.rel (0) target = $region53
  $region52: #{actor_forward.1} parent=0 // pred_region
    _
  $region53: #{actor_forward.1} parent=0 // pred_fallthru
    _
  // Predicated region
  $region54: #{actor_forward.1} parent=0 // pred_check
    _
  $region55: #{actor_forward.1} parent=0 // pred_check_branch
    %489 = sbr.rel (0) target = $region57
  $region56: #{actor_forward.1} parent=0 // pred_region
    _
  $region57: #{actor_forward.1} parent=0 // pred_fallthru
    _

</llo_original>
